<compile_context>
chip_gen: v5e
topology: v5e:2x2
jax: 0.10.0
libtpu: 0.0.40
codegen_flags: <defaults>
</compile_context>

<pallas_src>
import jax
import jax.numpy as jnp
from jax import lax
from jax.experimental import pallas as pl
from jax.experimental.pallas import tpu as pltpu
import numpy as np


# ----------------------------- Pallas kernel -------------------------------

def encoder_kernel(x_ref, w1_ref, b1_ref, w2_ref, b2_ref, w3_ref, b3_ref, o_ref):
    # Layer 1 (fused conv+BN, ReLU), computed channel-major:
    #   h1[c, m] = sum_f W1f[c, f] * x[m, f]   ->  (C1, tile_m)
    # NT matmul (same pattern as q @ k^T), bf16 operands, f32 accumulation.
    h = lax.dot_general(
        w1_ref[...], x_ref[...],
        dimension_numbers=(((1,), (1,)), ((), ())),
        preferred_element_type=jnp.float32)
    h = jnp.maximum(h + b1_ref[...], 0.0)

    # Layers 2/3: bf16 weights and a bf16 moving operand (single-pass MXU
    # issue, 16 sublanes/vreg) with f32 accumulation; bias + ReLU stay f32.
    h = jnp.dot(w2_ref[...], h.astype(jnp.bfloat16),
                preferred_element_type=jnp.float32)
    h = jnp.maximum(h + b2_ref[...], 0.0)

    h = jnp.dot(w3_ref[...], h.astype(jnp.bfloat16),
                preferred_element_type=jnp.float32)
    h = jnp.maximum(h + b3_ref[...], 0.0)

    # Lane-dense store: last dim is tile_m (a multiple of 128 or the full N).
    o_ref[...] = h.astype(o_ref.dtype)


def encoder_pallas(x_flat, w1, b1, w2, b2, w3, b3, *, tile_m=8192):
    """x_flat: (N, F) channels-last pixels.  Returns (C_out, N) channel-major."""
    N, F = x_flat.shape
    C1 = w1.shape[0]
    C2 = w2.shape[0]
    C3 = w3.shape[0]

    # bf16 everywhere on the MXU (streamed x, all weights); biases and
    # accumulation stay f32 inside the kernel.
    x_bf = x_flat.astype(jnp.bfloat16)
    w1_bf = w1.astype(jnp.bfloat16)
    w2_bf = w2.astype(jnp.bfloat16)
    w3_bf = w3.astype(jnp.bfloat16)
    b1 = b1.astype(jnp.float32)
    b2 = b2.astype(jnp.float32)
    b3 = b3.astype(jnp.float32)

    # --- tile sizing -------------------------------------------------------
    # VMEM accounting: the (tile_m, 32) bf16 x block lane-pads 32 -> 128, so
    # each x buffer is tile_m*128*2 bytes; output buffer is C3*tile_m*4 bytes;
    # both are double-buffered.  Clamp tile_m so this stays under ~12 MiB
    # (inside v5e's 16 MiB scoped default with headroom).
    bytes_per_row = 2 * (128 * 2 + C3 * 4)               # double-buffered x + out
    vmem_cap_rows = (12 * 1024 * 1024) // bytes_per_row

    if N <= 256:
        tile_m = N                                       # single full block (always legal)
    else:
        # Keep >=2 lane-dense blocks so v7x's 2 TensorCores both get work.
        two_block_cap = ((pl.cdiv(N, 2) + 127) // 128) * 128
        tile_m = (max(128, tile_m) // 128) * 128
        tile_m = max(128, min(tile_m, two_block_cap, (vmem_cap_rows // 128) * 128))

    grid = (pl.cdiv(N, tile_m),)

    full = lambda i: (0, 0)

    cost = pl.CostEstimate(
        flops=int(2 * N * (F * C1 + C1 * C2 + C2 * C3)),
        transcendentals=0,
        bytes_accessed=int(N * F * 2 + N * C3 * 4
                           + C1 * F * 2 + C2 * C1 * 2 + C3 * C2 * 2
                           + (C1 + C2 + C3) * 4),
    )

    # Only raise the scoped-VMEM limit if the padded double-buffered footprint
    # would actually exceed the smallest (v5e) default.
    vmem_est = tile_m * bytes_per_row + (1 << 20)        # + slack for weights/biases
    cp_kwargs = dict(dimension_semantics=("parallel",))
    if vmem_est > 14 * 1024 * 1024:
        cp_kwargs["vmem_limit_bytes"] = min(int(vmem_est * 1.25), 48 * 1024 * 1024)

    return pl.pallas_call(
        encoder_kernel,
        out_shape=jax.ShapeDtypeStruct((C3, N), jnp.float32),
        grid_spec=pltpu.PrefetchScalarGridSpec(
            num_scalar_prefetch=0,
            grid=grid,
            in_specs=[
                pl.BlockSpec((tile_m, F), lambda i: (i, 0)),   # x rows (streamed, bf16)
                pl.BlockSpec((C1, F), full),                   # fused W1 (bf16)
                pl.BlockSpec((C1, 1), full),                   # fused b1 (f32)
                pl.BlockSpec((C2, C1), full),                  # fused W2 (bf16)
                pl.BlockSpec((C2, 1), full),
                pl.BlockSpec((C3, C2), full),                  # fused W3 (bf16)
                pl.BlockSpec((C3, 1), full),
            ],
            out_specs=pl.BlockSpec((C3, tile_m), lambda i: (0, i)),
        ),
        compiler_params=pltpu.CompilerParams(**cp_kwargs),
        cost_estimate=cost,
    )(x_bf, w1_bf, b1, w2_bf, b2, w3_bf, b3)


# ------------------------------ glue / params ------------------------------

def make_params(key, in_c, out_c):
    """Deterministic synthetic params for Conv2d(1x1) + BatchNorm2d."""
    k = jax.random.split(key, 6)
    bound = 1.0 / np.sqrt(in_c)
    w = jax.random.uniform(k[0], (out_c, in_c), jnp.float32, -bound, bound)
    b = jax.random.uniform(k[1], (out_c,), jnp.float32, -bound, bound)
    gamma = 1.0 + 0.1 * jax.random.normal(k[2], (out_c,), jnp.float32)
    beta = 0.1 * jax.random.normal(k[3], (out_c,), jnp.float32)
    run_mean = 0.1 * jax.random.normal(k[4], (out_c,), jnp.float32)
    run_var = jnp.abs(jax.random.normal(k[5], (out_c,), jnp.float32)) + 0.5
    return w, b, gamma, beta, run_mean, run_var


def fold_bn(w, b, gamma, beta, run_mean, run_var, eps=1e-5):
    """Fold eval-mode BatchNorm into the preceding 1x1 conv.

    Returns Wf (out_c, in_c) channel-major and bf (out_c, 1) such that
      act(Wf @ x + bf) == act(BN(W @ x + b)).
    """
    scale = gamma / jnp.sqrt(run_var + eps)          # (out_c,)
    wf = w * scale[:, None]                          # (out_c, in_c)
    bf = (b - run_mean) * scale + beta               # (out_c,)
    return wf.astype(jnp.float32), bf.reshape(-1, 1).astype(jnp.float32)


def encoder_forward(x, layer_params):
    """x: (B, W, T, F) like the PyTorch input (before its internal permute).

    Returns (B, C_last, T, W), matching the PyTorch NCHW output.
    """
    B, W, T, F = x.shape
    # 1x1 convs act per-pixel -> flatten pixels directly (no input transpose).
    x_flat = x.reshape(B * W * T, F)

    (w1, b1), (w2, b2), (w3, b3) = layer_params
    y_t = encoder_pallas(x_flat, w1, b1, w2, b2, w3, b3)   # (C_out, B*W*T)

    C_out = y_t.shape[0]
    y = y_t.reshape(C_out, B, W, T)
    # Small output-side reorder (8 channels) to the PyTorch NCHW layout; f32
    # kept to match the module's output dtype (bf16 output is a further win
    # on v5e if the consumer tolerates it).
    return jnp.transpose(y, (1, 0, 3, 2))                  # (B, C_out, T, W)


def encoder_reference(x, raw_params):
    """Pure-JAX f32 reference (eval-mode BN), mirrors the PyTorch module."""
    B, W, T, F = x.shape
    h = x.reshape(B * W * T, F)
    for (w, b, g, beta, m, v) in raw_params:
        h = h @ w.T + b
        h = (h - m) / jnp.sqrt(v + 1e-5) * g + beta
        h = jnp.maximum(h, 0.0)
    C_out = h.shape[-1]
    return jnp.transpose(h.reshape(B, W, T, C_out), (0, 3, 2, 1))


# --------------------------------- main -------------------------------------

if __name__ == "__main__":
    # model_dict equivalent:
    #   frequency_bins = [0, 32]  -> feature_dim = 32
    #   encoder        = [32, 16, 8]
    #   encoder_act    = 'relu'
    feature_dim = 32
    encoder_layers = [32, 16, 8]

    key = jax.random.PRNGKey(0)
    kx, kp = jax.random.split(key)

    # Input: (B, W, T, F) = (2, 4, 16, 32); permuted internally to (2, 32, 16, 4)
    B, Wd, Td = 2, 4, 16
    x = jax.random.normal(kx, (B, Wd, Td, feature_dim), jnp.float32)

    raw_params = []
    fused_params = []
    in_c = feature_dim
    pkeys = jax.random.split(kp, len(encoder_layers))
    for out_c, k in zip(encoder_layers, pkeys):
        w, b, g, beta, m, v = make_params(k, in_c, out_c)
        raw_params.append((w, b, g, beta, m, v))
        fused_params.append(fold_bn(w, b, g, beta, m, v))
        in_c = out_c

    y = jax.block_until_ready(encoder_forward(x, fused_params))

    y_ref = encoder_reference(x, raw_params)
    assert y.shape == (B, encoder_layers[-1], Td, Wd), y.shape
    # bf16 operands throughout the matmul chain (f32 accumulation) => relaxed
    # tolerance vs the f32 reference.
    np.testing.assert_allclose(np.asarray(y), np.asarray(y_ref),
                               rtol=5e-2, atol=5e-2)

    # TODO(synk): training-mode BatchNorm (batch statistics) is not modeled;
    # eval-mode running stats are folded into the 1x1 convs instead.
    print("KERNEL_OK")
</pallas_src>

<mosaic_0001>
module attributes {stable_mosaic.version = 11 : i64} {
  func.func @encoder_kernel(%arg0: i32, %arg1: memref<128x32xbf16, #tpu.memory_space<vmem>>, %arg2: memref<32x32xbf16, #tpu.memory_space<vmem>>, %arg3: memref<32x1xf32, #tpu.memory_space<vmem>>, %arg4: memref<16x32xbf16, #tpu.memory_space<vmem>>, %arg5: memref<16x1xf32, #tpu.memory_space<vmem>>, %arg6: memref<8x16xbf16, #tpu.memory_space<vmem>>, %arg7: memref<8x1xf32, #tpu.memory_space<vmem>>, %arg8: memref<8x128xf32, #tpu.memory_space<vmem>>) attributes {dimension_semantics = [#tpu.dimension_semantics<parallel>], iteration_bounds = array<i64: 1>, scalar_prefetch = 0 : i64, scratch_operands = 0 : i64, tpu.core_type = #tpu.core_type<tc>, window_params = [{transform_indices = @transform_0, window_bounds = array<i64: 128, 32>}, {pipeline_mode = #tpu.pipeline_mode<synchronous>, transform_indices = @transform_1, window_bounds = array<i64: 32, 32>}, {pipeline_mode = #tpu.pipeline_mode<synchronous>, transform_indices = @transform_2, window_bounds = array<i64: 32, 1>}, {pipeline_mode = #tpu.pipeline_mode<synchronous>, transform_indices = @transform_3, window_bounds = array<i64: 16, 32>}, {pipeline_mode = #tpu.pipeline_mode<synchronous>, transform_indices = @transform_4, window_bounds = array<i64: 16, 1>}, {pipeline_mode = #tpu.pipeline_mode<synchronous>, transform_indices = @transform_5, window_bounds = array<i64: 8, 16>}, {pipeline_mode = #tpu.pipeline_mode<synchronous>, transform_indices = @transform_6, window_bounds = array<i64: 8, 1>}, {transform_indices = @transform_7, window_bounds = array<i64: 8, 128>}]} {
    %c0 = arith.constant 0 : index
    %c0_0 = arith.constant 0 : index
    %0 = vector.load %arg2[%c0, %c0_0] : memref<32x32xbf16, #tpu.memory_space<vmem>>, vector<32x32xbf16>
    %c0_1 = arith.constant 0 : index
    %c0_2 = arith.constant 0 : index
    %1 = vector.load %arg1[%c0_1, %c0_2] : memref<128x32xbf16, #tpu.memory_space<vmem>>, vector<128x32xbf16>
    %cst = arith.constant dense<0.000000e+00> : vector<32x128xf32>
    %2 = tpu.matmul %0, %1, %cst {dimension_numbers = #tpu.dot_dimension_numbers<[1], [1], [0], [0], [0, 0, 1, 0], [], []>} : vector<32x32xbf16>, vector<128x32xbf16>, vector<32x128xf32> -> vector<32x128xf32>
    %c0_3 = arith.constant 0 : index
    %c0_4 = arith.constant 0 : index
    %3 = vector.load %arg3[%c0_3, %c0_4] : memref<32x1xf32, #tpu.memory_space<vmem>>, vector<32x1xf32>
    %4 = vector.broadcast %3 : vector<32x1xf32> to vector<32x128xf32>
    %5 = arith.addf %2, %4 : vector<32x128xf32>
    %cst_5 = arith.constant 0.000000e+00 : f32
    %6 = vector.broadcast %cst_5 : f32 to vector<32x128xf32>
    %7 = arith.maximumf %5, %6 : vector<32x128xf32>
    %c0_6 = arith.constant 0 : index
    %c0_7 = arith.constant 0 : index
    %8 = vector.load %arg4[%c0_6, %c0_7] : memref<16x32xbf16, #tpu.memory_space<vmem>>, vector<16x32xbf16>
    %9 = arith.truncf %7 : vector<32x128xf32> to vector<32x128xbf16>
    %cst_8 = arith.constant dense<0.000000e+00> : vector<16x128xf32>
    %10 = tpu.matmul %8, %9, %cst_8 {dimension_numbers = #tpu.dot_dimension_numbers<[1], [0], [0], [1], [0, 0, 1, 1], [], []>} : vector<16x32xbf16>, vector<32x128xbf16>, vector<16x128xf32> -> vector<16x128xf32>
    %c0_9 = arith.constant 0 : index
    %c0_10 = arith.constant 0 : index
    %11 = vector.load %arg5[%c0_9, %c0_10] : memref<16x1xf32, #tpu.memory_space<vmem>>, vector<16x1xf32>
    %12 = vector.broadcast %11 : vector<16x1xf32> to vector<16x128xf32>
    %13 = arith.addf %10, %12 : vector<16x128xf32>
    %cst_11 = arith.constant 0.000000e+00 : f32
    %14 = vector.broadcast %cst_11 : f32 to vector<16x128xf32>
    %15 = arith.maximumf %13, %14 : vector<16x128xf32>
    %c0_12 = arith.constant 0 : index
    %c0_13 = arith.constant 0 : index
    %16 = vector.load %arg6[%c0_12, %c0_13] : memref<8x16xbf16, #tpu.memory_space<vmem>>, vector<8x16xbf16>
    %17 = arith.truncf %15 : vector<16x128xf32> to vector<16x128xbf16>
    %cst_14 = arith.constant dense<0.000000e+00> : vector<8x128xf32>
    %18 = tpu.matmul %16, %17, %cst_14 {dimension_numbers = #tpu.dot_dimension_numbers<[1], [0], [0], [1], [0, 0, 1, 1], [], []>} : vector<8x16xbf16>, vector<16x128xbf16>, vector<8x128xf32> -> vector<8x128xf32>
    %c0_15 = arith.constant 0 : index
    %c0_16 = arith.constant 0 : index
    %19 = vector.load %arg7[%c0_15, %c0_16] : memref<8x1xf32, #tpu.memory_space<vmem>>, vector<8x1xf32>
    %20 = vector.broadcast %19 : vector<8x1xf32> to vector<8x128xf32>
    %21 = arith.addf %18, %20 : vector<8x128xf32>
    %cst_17 = arith.constant 0.000000e+00 : f32
    %22 = vector.broadcast %cst_17 : f32 to vector<8x128xf32>
    %23 = arith.maximumf %21, %22 : vector<8x128xf32>
    %c0_18 = arith.constant 0 : index
    %c0_19 = arith.constant 0 : index
    %24 = vector.load %arg8[%c0_18, %c0_19] : memref<8x128xf32, #tpu.memory_space<vmem>>, vector<8x128xf32>
    tpu.vector_store %arg8[%c0_18, %c0_19], %23 {strides = array<i32>} : memref<8x128xf32, #tpu.memory_space<vmem>>, vector<8x128xf32>,
    return
  }
  func.func @transform_0(%arg0: i32) -> (i32, i32) {
    %c0_i32 = arith.constant 0 : i32
    %c0_i32_0 = arith.constant 0 : i32
    return %arg0, %c0_i32 : i32, i32
  }
  func.func @transform_1(%arg0: i32) -> (i32, i32) {
    %c0_i32 = arith.constant 0 : i32
    %c0_i32_0 = arith.constant 0 : i32
    %c0_i32_1 = arith.constant 0 : i32
    return %c0_i32, %c0_i32_0 : i32, i32
  }
  func.func @transform_2(%arg0: i32) -> (i32, i32) {
    %c0_i32 = arith.constant 0 : i32
    %c0_i32_0 = arith.constant 0 : i32
    %c0_i32_1 = arith.constant 0 : i32
    return %c0_i32, %c0_i32_0 : i32, i32
  }
  func.func @transform_3(%arg0: i32) -> (i32, i32) {
    %c0_i32 = arith.constant 0 : i32
    %c0_i32_0 = arith.constant 0 : i32
    %c0_i32_1 = arith.constant 0 : i32
    return %c0_i32, %c0_i32_0 : i32, i32
  }
  func.func @transform_4(%arg0: i32) -> (i32, i32) {
    %c0_i32 = arith.constant 0 : i32
    %c0_i32_0 = arith.constant 0 : i32
    %c0_i32_1 = arith.constant 0 : i32
    return %c0_i32, %c0_i32_0 : i32, i32
  }
  func.func @transform_5(%arg0: i32) -> (i32, i32) {
    %c0_i32 = arith.constant 0 : i32
    %c0_i32_0 = arith.constant 0 : i32
    %c0_i32_1 = arith.constant 0 : i32
    return %c0_i32, %c0_i32_0 : i32, i32
  }
  func.func @transform_6(%arg0: i32) -> (i32, i32) {
    %c0_i32 = arith.constant 0 : i32
    %c0_i32_0 = arith.constant 0 : i32
    %c0_i32_1 = arith.constant 0 : i32
    return %c0_i32, %c0_i32_0 : i32, i32
  }
  func.func @transform_7(%arg0: i32) -> (i32, i32) {
    %c0_i32 = arith.constant 0 : i32
    %c0_i32_0 = arith.constant 0 : i32
    return %c0_i32, %arg0 : i32, i32
  }
}

</mosaic_0001>

<llo_original>
// kernel: tpu_custom_call.1
$region0: #{tpu_custom_call.1}
  #allocation0 [shape = 'u32[]', space=smem, size = 0x4, offset = 0x4, fixed_abs, tag = 'smem constant byte address 0x4 - core index']
  #allocation1 [shape = 'u32[72,128]{1,0:T(1,128)}', space=vmem, size = 0x9000, scoped, tag = 'internal scratch']
  %s0 = inlined_call_operand.vmem [shape: bf16[128,32], index: 0, kind: input, shape index: {}]
  %s1 = inlined_call_operand.vmem [shape: bf16[32,32], index: 1, kind: input, shape index: {}]
  %s2 = inlined_call_operand.vmem [shape: f32[32,1], index: 2, kind: input, shape index: {}]
  %s3 = inlined_call_operand.vmem [shape: bf16[16,32], index: 3, kind: input, shape index: {}]
  %s4 = inlined_call_operand.vmem [shape: f32[16,1], index: 4, kind: input, shape index: {}]
  %s5 = inlined_call_operand.vmem [shape: bf16[8,16], index: 5, kind: input, shape index: {}]
  %s6 = inlined_call_operand.vmem [shape: f32[8,1], index: 6, kind: input, shape index: {}]
  %s7 = inlined_call_operand.hbm [shape: f32[8,128], index: 7, kind: output, shape index: {}]
  %s8 = sld [smem:[#allocation0]]
  $region38: #{tpu_custom_call.1} parent=0
    _
  %s10 = ssub.s32 1, %s8
  %s11 = scalar_select 0, %s10, %s8
  $region1: #{tpu_custom_call.1} parent=0
    #allocation2 [shape = 'u8[4096]{0}', space=vmem, size = 0x1000, scoped, tag = 'output window, operand 0, single buffered']
    #allocation3 [shape = 's32[1]{0}', space=sflag, size = 0x4, scoped, tag = 'scoped memory for tpu_custom_call.1']
    %12 = vsyncpa [#allocation3], 0
    // Predicated region
    $region2: #{tpu_custom_call.1} parent=1 // pred_check
      _
    $region3: #{tpu_custom_call.1} parent=1 // pred_check_branch
      %14 = sbr.rel (0) target = $region5
    $region4: #{tpu_custom_call.1} parent=1 // pred_region
      _
    $region5: #{tpu_custom_call.1} parent=1 // pred_fallthru
      _
    // Predicated region
    $region6: #{tpu_custom_call.1} parent=1 // pred_check
      _
    $region7: #{tpu_custom_call.1} parent=1 // pred_check_branch
      %16 = sbr.rel (0) target = $region9
    $region8: #{tpu_custom_call.1} parent=1 // pred_region
      _
    $region9: #{tpu_custom_call.1} parent=1 // pred_fallthru
      _
    // Predicated region
    $region10: #{tpu_custom_call.1} parent=1 // pred_check
      _
    $region11: #{tpu_custom_call.1} parent=1 // pred_check_branch
      %18 = sbr.rel (0) target = $region13
    $region12: #{tpu_custom_call.1} parent=1 // pred_region
      _
    $region13: #{tpu_custom_call.1} parent=1 // pred_fallthru
      _
    // Predicated region
    $region14: #{tpu_custom_call.1} parent=1 // pred_check
      _
    $region15: #{tpu_custom_call.1} parent=1 // pred_check_branch
      %20 = sbr.rel (0) target = $region17
    $region16: #{tpu_custom_call.1} parent=1 // pred_region
      _
    $region17: #{tpu_custom_call.1} parent=1 // pred_fallthru
      _
    // Predicated region
    $region18: #{tpu_custom_call.1} parent=1 // pred_check
      _
    $region19: #{tpu_custom_call.1} parent=1 // pred_check_branch
      %22 = sbr.rel (0) target = $region21
    $region20: #{tpu_custom_call.1} parent=1 // pred_region
      _
    $region21: #{tpu_custom_call.1} parent=1 // pred_fallthru
      _
    // Predicated region
    $region22: #{tpu_custom_call.1} parent=1 // pred_check
      _
    $region23: #{tpu_custom_call.1} parent=1 // pred_check_branch
      %24 = sbr.rel (0) target = $region25
    $region24: #{tpu_custom_call.1} parent=1 // pred_region
      _
    $region25: #{tpu_custom_call.1} parent=1 // pred_fallthru
      _
    // Predicated region
    $region26: #{tpu_custom_call.1} parent=1 // pred_check
      _
    $region27: #{tpu_custom_call.1} parent=1 // pred_check_branch
      %26 = sbr.rel (0) target = $region29
    $region28: #{tpu_custom_call.1} parent=1 // pred_region
      _
    $region29: #{tpu_custom_call.1} parent=1 // pred_fallthru
      _
    %v28 = vld [vmem:[%s1] sm:$0xf]
    %v29 = vld [vmem:[%s1 + $0x4] sm:$0xf]
    %v30 = vld [vmem:[%s1 + $0x8] sm:$0xf]
    %v31 = vld [vmem:[%s1 + $0xc] sm:$0xf]
    %v32 = vld [vmem:[%s0] sm:$0xf]
    %v33 = vld [vmem:[%s0 + $0x4] sm:$0xf]
    %v34 = vld [vmem:[%s0 + $0x8] sm:$0xf]
    %v35 = vld [vmem:[%s0 + $0xc] sm:$0xf]
    %v36 = vld [vmem:[%s0 + $0x10] sm:$0xf]
    %v37 = vld [vmem:[%s0 + $0x14] sm:$0xf]
    %v38 = vld [vmem:[%s0 + $0x18] sm:$0xf]
    %v39 = vld [vmem:[%s0 + $0x1c] sm:$0xf]
    %v40 = vld [vmem:[%s0 + $0x20] sm:$0xf]
    %v41 = vld [vmem:[%s0 + $0x24] sm:$0xf]
    %v42 = vld [vmem:[%s0 + $0x28] sm:$0xf]
    %v43 = vld [vmem:[%s0 + $0x2c] sm:$0xf]
    %v44 = vld [vmem:[%s0 + $0x30] sm:$0xf]
    %v45 = vld [vmem:[%s0 + $0x34] sm:$0xf]
    %v46 = vld [vmem:[%s0 + $0x38] sm:$0xf]
    %v47 = vld [vmem:[%s0 + $0x3c] sm:$0xf]
    %v48 = vld [vmem:[%s2] sm:$0xff]
    %v49 = vld [vmem:[%s2 + $0x8] sm:$0xff]
    %v50 = vld [vmem:[%s2 + $0x10] sm:$0xff]
    %v51 = vld [vmem:[%s2 + $0x18] sm:$0xff]
    %53 = vset.pattern.permute.xlu0 0
    %54 = vperm.xlu0 %53, %v48
    %v55 = vpop.permute.xlu0 %54
    %58 = vset.pattern.permute.xlu0 0
    %59 = vperm.xlu0 %58, %v49
    %v60 = vpop.permute.xlu0 %59
    %63 = vset.pattern.permute.xlu0 0
    %64 = vperm.xlu0 %63, %v50
    %v65 = vpop.permute.xlu0 %64
    %68 = vset.pattern.permute.xlu0 0
    %69 = vperm.xlu0 %68, %v51
    %v70 = vpop.permute.xlu0 %69
    %v76 = vunpack.c.l.b16 %v28
    %v77 = vunpack.c.l.b16 %v29
    %v78 = vunpack.c.l.b16 %v30
    %v79 = vunpack.c.l.b16 %v31
    %v80 = vpack.c.b16 %v77, %v76
    %v81 = vpack.c.b16 %v79, %v78
    %v98 = vunpack.c.l.b16 %v32
    %v99 = vunpack.c.l.b16 %v33
    %v100 = vunpack.c.l.b16 %v34
    %v101 = vunpack.c.l.b16 %v35
    %v102 = vunpack.c.l.b16 %v36
    %v103 = vunpack.c.l.b16 %v37
    %v104 = vunpack.c.l.b16 %v38
    %v105 = vunpack.c.l.b16 %v39
    %v106 = vunpack.c.l.b16 %v40
    %v107 = vunpack.c.l.b16 %v41
    %v108 = vunpack.c.l.b16 %v42
    %v109 = vunpack.c.l.b16 %v43
    %v110 = vunpack.c.l.b16 %v44
    %v111 = vunpack.c.l.b16 %v45
    %v112 = vunpack.c.l.b16 %v46
    %v113 = vunpack.c.l.b16 %v47
    %v114 = vpack.c.b16 %v99, %v98
    %v115 = vpack.c.b16 %v101, %v100
    %v116 = vpack.c.b16 %v103, %v102
    %v117 = vpack.c.b16 %v105, %v104
    %v118 = vpack.c.b16 %v107, %v106
    %v119 = vpack.c.b16 %v109, %v108
    %v120 = vpack.c.b16 %v111, %v110
    %v121 = vpack.c.b16 %v113, %v112
    %vm122 = vcmask 261120
    %v124 = vsel %vm122, %v80, 0
    %v127 = vsel %vm122, %v81, 0
    %v130 = vsel %vm122, %v114, 0
    %v133 = vsel %vm122, %v115, 0
    %v136 = vsel %vm122, %v116, 0
    %v139 = vsel %vm122, %v117, 0
    %v142 = vsel %vm122, %v118, 0
    %v145 = vsel %vm122, %v119, 0
    %v148 = vsel %vm122, %v120, 0
    %v151 = vsel %vm122, %v121, 0
    %153 = vmatpush.bf16.xpose.msra.mxu0 %v151
    %154 = vmatpush.bf16.xpose.msra.mxu0 %v148
    %155 = vmatpush.bf16.xpose.msra.mxu0 %v145
    %156 = vmatpush.bf16.xpose.msra.mxu0 %v142
    %157 = vmatpush.bf16.xpose.msra.mxu0 %v139
    %158 = vmatpush.bf16.xpose.msra.mxu0 %v136
    %159 = vmatpush.bf16.xpose.msra.mxu0 %v133
    %160 = vmatpush.bf16.xpose.msra.mxu0 %v130
    %161 = vmatmul.bf16.gmra.mxu0 %v124
    %v162 = vpop.f32.mrf.mxu0
    %v163 = vadd.f32 %v55, %v162
    %v164 = vpop.f32.mrf.mxu0
    %v165 = vadd.f32 %v60, %v164
    %166 = vmatmul.bf16.gmra.mxu0 %v127
    %v167 = vpop.f32.mrf.mxu0
    %v168 = vadd.f32 %v65, %v167
    %v169 = vpop.f32.mrf.mxu0
    %v170 = vadd.f32 %v70, %v169
    %171 = vdwg.mxu0
    %v172 = vmax.f32 %v163, 0.0
    %v173 = vmax.f32 %v165, 0.0
    %v174 = vmax.f32 %v168, 0.0
    %v175 = vmax.f32 %v170, 0.0
    %v176 = vld [vmem:[%s3] sm:$0xf]
    %v177 = vld [vmem:[%s3 + $0x4] sm:$0xf]
    %v178 = vpack.c.bf16 %v173, %v172
    %v179 = vpack.c.bf16 %v175, %v174
    %v180 = vld [vmem:[%s4] sm:$0xff]
    %v181 = vld [vmem:[%s4 + $0x8] sm:$0xff]
    %183 = vset.pattern.permute.xlu0 0
    %184 = vperm.xlu0 %183, %v180
    %v185 = vpop.permute.xlu0 %184
    %188 = vset.pattern.permute.xlu0 0
    %189 = vperm.xlu0 %188, %v181
    %v190 = vpop.permute.xlu0 %189
    %v194 = vunpack.c.l.b16 %v176
    %v195 = vunpack.c.l.b16 %v177
    %v196 = vpack.c.b16 %v195, %v194
    %v198 = vsel %vm122, %v196, 0
    %200 = vmatpush.bf16.msra.mxu0 0
    %201 = vmatpush.bf16.msra.mxu0 0
    %202 = vmatpush.bf16.msra.mxu0 0
    %203 = vmatpush.bf16.msra.mxu0 0
    %204 = vmatpush.bf16.msra.mxu0 0
    %205 = vmatpush.bf16.msra.mxu0 0
    %206 = vmatpush.bf16.msra.mxu0 %v179
    %207 = vmatpush.bf16.msra.mxu0 %v178
    %208 = vmatmul.bf16.gmra.mxu0 %v198
    %v209 = vpop.f32.mrf.mxu0
    %v210 = vadd.f32 %v185, %v209
    %v211 = vpop.f32.mrf.mxu0
    %v212 = vadd.f32 %v190, %v211
    %213 = vdwg.mxu0
    %v214 = vmax.f32 %v210, 0.0
    %v215 = vmax.f32 %v212, 0.0
    %v216 = vld [vmem:[%s5] sm:$0xf]
    %v217 = vpack.c.bf16 %v215, %v214
    %v218 = vld [vmem:[%s6] sm:$0xff]
    %220 = vset.pattern.permute.xlu0 0
    %221 = vperm.xlu0 %220, %v218
    %v222 = vpop.permute.xlu0 %221
    %vm224 = vcmask 130048
    %v226 = vsel %vm224, %v216, 0
    %228 = vmatpush.bf16.msra.mxu0 0
    %229 = vmatpush.bf16.msra.mxu0 0
    %230 = vmatpush.bf16.msra.mxu0 0
    %231 = vmatpush.bf16.msra.mxu0 0
    %232 = vmatpush.bf16.msra.mxu0 0
    %233 = vmatpush.bf16.msra.mxu0 0
    %234 = vmatpush.bf16.msra.mxu0 0
    %235 = vmatpush.bf16.msra.mxu0 %v217
    %236 = vmatmul.bf16.gmra.mxu0 %v226
    %v237 = vpop.f32.mrf.mxu0
    %v238 = vadd.f32 %v222, %v237
    %v239 = vpop.f32.mrf.mxu0
    %240 = vdwg.mxu0
    %v241 = vmax.f32 %v238, 0.0
    %242 = vst [vmem:[#allocation2] sm:$0xff] %v241
    // Predicated region
    $region30: #{tpu_custom_call.1} parent=1 // pred_check
      _
    $region31: #{tpu_custom_call.1} parent=1 // pred_check_branch
      %244 = sbr.rel (0) target = $region33
    $region32: #{tpu_custom_call.1} parent=1 // pred_region
      %246 = vsyncadd [#allocation3], 0
      %s248 = sshll.u32 [#allocation2], 4
      %s249 = int_to_ptr.vmem [resolvable:$true] %s248
      %s250 = sshll.u32 %s7, 4
      %s251 = int_to_ptr.hbm [resolvable:$true] %s250
      %253 = dma.vmem_to_hbm [thread:$0]  %s249, 128, %s251, [#allocation3]
    $region33: #{tpu_custom_call.1} parent=1 // pred_fallthru
      _
    // Predicated region
    $region34: #{tpu_custom_call.1} parent=1 // pred_check
      _
    $region35: #{tpu_custom_call.1} parent=1 // pred_check_branch
      %255 = sbr.rel (0) target = $region37
    $region36: #{tpu_custom_call.1} parent=1 // pred_region
      %257 = dma.done [#allocation3], 128
    $region37: #{tpu_custom_call.1} parent=1 // pred_fallthru
      _
    %258 = vsyncpa [#allocation3], 1

</llo_original>
